<compile_context>
chip_gen: v6e
topology: v6e:2x2x1
jax: 0.10.0
libtpu: 0.0.40
codegen_flags: <defaults>
</compile_context>

<pallas_src>
import jax
import jax.numpy as jnp
from jax.experimental import pallas as pl
from jax.experimental.pallas import tpu as pltpu


def _round_up(v, m):
    return ((v + m - 1) // m) * m


def _dual_head_kernel(x_ref, w_emb_ref, b_emb_ref, w_head_ref, b_head_ref, out_ref):
    # x_ref: (tb, in_dim_p) batch tile; weights are resident (constant block index).
    hidden = jnp.dot(x_ref[...], w_emb_ref[...], preferred_element_type=jnp.float32)
    hidden = hidden + b_emb_ref[...]                       # (tb, n_hid_p), lane-dense

    # Fused hazard + projection head: single MXU matmul, lane-dense output.
    out = jnp.dot(hidden, w_head_ref[...], preferred_element_type=jnp.float32)
    out_ref[...] = (out + b_head_ref[...]).astype(out_ref.dtype)


def dual_headed_projection(x, w_emb, b_emb, w_haz, b_haz, w_proj, b_proj,
                           *, batch_tile=512):
    """Equivalent of DualHeadedProjection.forward(x).

    Weights are pre-transposed relative to torch.nn.Linear:
      w_emb: (in_dim, n_hid), w_haz: (n_hid, 1), w_proj: (n_hid, proj_dim)
    Returns (h, proj) with shapes (N, 1) and (N, proj_dim).
    """
    N = x.shape[0]
    in_dim = 1
    for d in x.shape[1:]:
        in_dim *= d
    x2 = x.reshape(N, in_dim)                              # Flatten()

    n_hid = w_emb.shape[1]
    proj_dim = w_proj.shape[1]
    assert w_emb.shape == (in_dim, n_hid)
    assert w_haz.shape == (n_hid, 1)
    assert w_proj.shape == (n_hid, proj_dim)
    dtype = x.dtype

    # --- lane/sublane alignment padding (all zero-padding => exact results) ---
    in_dim_p = _round_up(in_dim, 128)
    n_hid_p = _round_up(n_hid, 128)
    head_out = _round_up(proj_dim + 1, 128)                # proj lanes + hazard lane

    if in_dim_p != in_dim:
        x2 = jnp.pad(x2, ((0, 0), (0, in_dim_p - in_dim)))

    w_emb_p = jnp.pad(w_emb, ((0, in_dim_p - in_dim), (0, n_hid_p - n_hid))).astype(dtype)
    b_emb_p = jnp.pad(b_emb, (0, n_hid_p - n_hid)).reshape(1, n_hid_p).astype(dtype)

    # Fused head weight: [proj | hazard | zero-pad]  -> (n_hid_p, head_out)
    w_head = jnp.concatenate([w_proj, w_haz], axis=1)
    w_head = jnp.pad(w_head, ((0, n_hid_p - n_hid),
                              (0, head_out - (proj_dim + 1)))).astype(dtype)
    b_head = jnp.concatenate([b_proj, b_haz], axis=0)
    b_head = jnp.pad(b_head, (0, head_out - (proj_dim + 1))).reshape(1, head_out).astype(dtype)

    # --- batch tiling: multiple of 8 sublanes; pad so every block is full ---
    tb = min(batch_tile, _round_up(N, 8))
    tb = _round_up(tb, 8)
    n_tiles = pl.cdiv(N, tb)
    n_pad = n_tiles * tb
    if n_pad != N:
        x2 = jnp.pad(x2, ((0, n_pad - N), (0, 0)))

    itemsize = jnp.dtype(dtype).itemsize
    cost = pl.CostEstimate(
        flops=2 * n_pad * (in_dim_p * n_hid_p + n_hid_p * head_out),
        transcendentals=0,
        bytes_accessed=(n_pad * in_dim_p + in_dim_p * n_hid_p + n_hid_p * head_out
                        + n_hid_p + head_out + n_pad * head_out) * itemsize,
    )

    fused = pl.pallas_call(
        _dual_head_kernel,
        out_shape=jax.ShapeDtypeStruct((n_pad, head_out), dtype),
        grid_spec=pltpu.PrefetchScalarGridSpec(
            num_scalar_prefetch=0,
            grid=(n_tiles,),
            in_specs=[
                pl.BlockSpec((tb, in_dim_p), lambda i: (i, 0)),      # x tile (pipelined)
                pl.BlockSpec((in_dim_p, n_hid_p), lambda i: (0, 0)),  # w_emb (resident)
                pl.BlockSpec((1, n_hid_p), lambda i: (0, 0)),         # b_emb
                pl.BlockSpec((n_hid_p, head_out), lambda i: (0, 0)),  # fused head weight
                pl.BlockSpec((1, head_out), lambda i: (0, 0)),        # fused head bias
            ],
            out_specs=pl.BlockSpec((tb, head_out), lambda i: (i, 0)),  # lane-dense output
        ),
        compiler_params=pltpu.CompilerParams(
            dimension_semantics=("parallel",),   # batch tiles split across TCs on v7x
        ),
        cost_estimate=cost,
    )(x2, w_emb_p, b_emb_p, w_head, b_head)

    proj = fused[:N, :proj_dim]
    h = fused[:N, proj_dim:proj_dim + 1]
    return h, proj


if __name__ == "__main__":
    key = jax.random.PRNGKey(0)
    N, C, H, W = 2, 4, 16, 16
    in_dim = C * H * W           # 1024
    n_hid, proj_dim = 200, 128   # module defaults

    keys = jax.random.split(key, 7)
    x = jax.random.normal(keys[0], (N, C, H, W), dtype=jnp.float32)

    def init_linear(kw, kb, fan_in, fan_out):
        bound = 1.0 / (fan_in ** 0.5)
        w = jax.random.uniform(kw, (fan_in, fan_out), minval=-bound, maxval=bound,
                               dtype=jnp.float32)
        b = jax.random.uniform(kb, (fan_out,), minval=-bound, maxval=bound,
                               dtype=jnp.float32)
        return w, b

    w_emb, b_emb = init_linear(keys[1], keys[2], in_dim, n_hid)
    w_haz, b_haz = init_linear(keys[3], keys[4], n_hid, 1)
    w_proj, b_proj = init_linear(keys[5], keys[6], n_hid, proj_dim)

    h, proj = dual_headed_projection(x, w_emb, b_emb, w_haz, b_haz, w_proj, b_proj)
    h, proj = jax.block_until_ready((h, proj))

    # plain-JAX reference
    xf = x.reshape(N, -1)
    hid_ref = xf @ w_emb + b_emb
    h_ref = hid_ref @ w_haz + b_haz
    p_ref = hid_ref @ w_proj + b_proj

    assert h.shape == (N, 1) and proj.shape == (N, proj_dim)
    assert jnp.allclose(h, h_ref, atol=1e-4, rtol=1e-4)
    assert jnp.allclose(proj, p_ref, atol=1e-4, rtol=1e-4)

    print("KERNEL_OK")
</pallas_src>

<mosaic_0001>
module attributes {stable_mosaic.version = 11 : i64} {
  func.func @_dual_head_kernel(%arg0: i32, %arg1: memref<8x1024xf32, #tpu.memory_space<vmem>>, %arg2: memref<1024x256xf32, #tpu.memory_space<vmem>>, %arg3: memref<1x256xf32, #tpu.memory_space<vmem>>, %arg4: memref<256x256xf32, #tpu.memory_space<vmem>>, %arg5: memref<1x256xf32, #tpu.memory_space<vmem>>, %arg6: memref<8x256xf32, #tpu.memory_space<vmem>>) attributes {dimension_semantics = [#tpu.dimension_semantics<parallel>], iteration_bounds = array<i64: 1>, scalar_prefetch = 0 : i64, scratch_operands = 0 : i64, tpu.core_type = #tpu.core_type<tc>, window_params = [{transform_indices = @transform_0, window_bounds = array<i64: 8, 1024>}, {pipeline_mode = #tpu.pipeline_mode<synchronous>, transform_indices = @transform_1, window_bounds = array<i64: 1024, 256>}, {pipeline_mode = #tpu.pipeline_mode<synchronous>, transform_indices = @transform_2, window_bounds = array<i64: 1, 256>}, {pipeline_mode = #tpu.pipeline_mode<synchronous>, transform_indices = @transform_3, window_bounds = array<i64: 256, 256>}, {pipeline_mode = #tpu.pipeline_mode<synchronous>, transform_indices = @transform_4, window_bounds = array<i64: 1, 256>}, {transform_indices = @transform_5, window_bounds = array<i64: 8, 256>}]} {
    %c0 = arith.constant 0 : index
    %c0_0 = arith.constant 0 : index
    %0 = vector.load %arg1[%c0, %c0_0] : memref<8x1024xf32, #tpu.memory_space<vmem>>, vector<8x1024xf32>
    %c0_1 = arith.constant 0 : index
    %c0_2 = arith.constant 0 : index
    %1 = vector.load %arg2[%c0_1, %c0_2] : memref<1024x256xf32, #tpu.memory_space<vmem>>, vector<1024x256xf32>
    %cst = arith.constant dense<0.000000e+00> : vector<8x256xf32>
    %2 = tpu.matmul %0, %1, %cst {dimension_numbers = #tpu.dot_dimension_numbers<[1], [0], [0], [1], [0, 0, 1, 1], [], []>} : vector<8x1024xf32>, vector<1024x256xf32>, vector<8x256xf32> -> vector<8x256xf32>
    %c0_3 = arith.constant 0 : index
    %c0_4 = arith.constant 0 : index
    %3 = vector.load %arg3[%c0_3, %c0_4] : memref<1x256xf32, #tpu.memory_space<vmem>>, vector<1x256xf32>
    %4 = vector.broadcast %3 : vector<1x256xf32> to vector<8x256xf32>
    %5 = arith.addf %2, %4 : vector<8x256xf32>
    %c0_5 = arith.constant 0 : index
    %c0_6 = arith.constant 0 : index
    %6 = vector.load %arg4[%c0_5, %c0_6] : memref<256x256xf32, #tpu.memory_space<vmem>>, vector<256x256xf32>
    %cst_7 = arith.constant dense<0.000000e+00> : vector<8x256xf32>
    %7 = tpu.matmul %5, %6, %cst_7 {dimension_numbers = #tpu.dot_dimension_numbers<[1], [0], [0], [1], [0, 0, 1, 1], [], []>} : vector<8x256xf32>, vector<256x256xf32>, vector<8x256xf32> -> vector<8x256xf32>
    %c0_8 = arith.constant 0 : index
    %c0_9 = arith.constant 0 : index
    %8 = vector.load %arg5[%c0_8, %c0_9] : memref<1x256xf32, #tpu.memory_space<vmem>>, vector<1x256xf32>
    %9 = vector.broadcast %8 : vector<1x256xf32> to vector<8x256xf32>
    %10 = arith.addf %7, %9 : vector<8x256xf32>
    %c0_10 = arith.constant 0 : index
    %c0_11 = arith.constant 0 : index
    %11 = vector.load %arg6[%c0_10, %c0_11] : memref<8x256xf32, #tpu.memory_space<vmem>>, vector<8x256xf32>
    tpu.vector_store %arg6[%c0_10, %c0_11], %10 {strides = array<i32>} : memref<8x256xf32, #tpu.memory_space<vmem>>, vector<8x256xf32>,
    return
  }
  func.func @transform_0(%arg0: i32) -> (i32, i32) {
    %c0_i32 = arith.constant 0 : i32
    %c0_i32_0 = arith.constant 0 : i32
    return %arg0, %c0_i32 : i32, i32
  }
  func.func @transform_1(%arg0: i32) -> (i32, i32) {
    %c0_i32 = arith.constant 0 : i32
    %c0_i32_0 = arith.constant 0 : i32
    %c0_i32_1 = arith.constant 0 : i32
    return %c0_i32, %c0_i32_0 : i32, i32
  }
  func.func @transform_2(%arg0: i32) -> (i32, i32) {
    %c0_i32 = arith.constant 0 : i32
    %c0_i32_0 = arith.constant 0 : i32
    %c0_i32_1 = arith.constant 0 : i32
    return %c0_i32, %c0_i32_0 : i32, i32
  }
  func.func @transform_3(%arg0: i32) -> (i32, i32) {
    %c0_i32 = arith.constant 0 : i32
    %c0_i32_0 = arith.constant 0 : i32
    %c0_i32_1 = arith.constant 0 : i32
    return %c0_i32, %c0_i32_0 : i32, i32
  }
  func.func @transform_4(%arg0: i32) -> (i32, i32) {
    %c0_i32 = arith.constant 0 : i32
    %c0_i32_0 = arith.constant 0 : i32
    %c0_i32_1 = arith.constant 0 : i32
    return %c0_i32, %c0_i32_0 : i32, i32
  }
  func.func @transform_5(%arg0: i32) -> (i32, i32) {
    %c0_i32 = arith.constant 0 : i32
    %c0_i32_0 = arith.constant 0 : i32
    return %arg0, %c0_i32 : i32, i32
  }
}

</mosaic_0001>

<llo_original>
// kernel: tpu_custom_call.1
$region0: #{tpu_custom_call.1}
  #allocation0 [shape = 'u32[]', space=smem, size = 0x4, offset = 0x4, fixed_abs, tag = 'smem constant byte address 0x4 - core index']
  #allocation1 [shape = 'u32[144,128]{1,0:T(1,128)}', space=vmem, size = 0x12000, scoped, tag = 'internal scratch']
  %s0 = inlined_call_operand.hbm [shape: f32[8,1024], index: 0, kind: input, shape index: {}]
  %s1 = inlined_call_operand.hbm [shape: f32[1024,256], index: 1, kind: input, shape index: {}]
  %s2 = inlined_call_operand.vmem [shape: f32[1,256], index: 2, kind: input, shape index: {}]
  %s3 = inlined_call_operand.hbm [shape: f32[256,256], index: 3, kind: input, shape index: {}]
  %s4 = inlined_call_operand.vmem [shape: f32[1,256], index: 4, kind: input, shape index: {}]
  %s5 = inlined_call_operand.hbm [shape: f32[8,256], index: 5, kind: output, shape index: {}]
  %s6 = sld [smem:[#allocation0]]
  $region42: #{tpu_custom_call.1} parent=0
    _
  %s8 = ssub.s32 1, %s6
  %s9 = scalar_select 0, %s8, %s6
  $region1: #{tpu_custom_call.1} parent=0
    #allocation2 [shape = 'u8[32768]{0}', space=vmem, size = 0x8000, scoped, tag = 'input window, operand 0, single buffered']
    #allocation3 [shape = 's32[1]{0}', space=sflag, size = 0x4, scoped, tag = 'scoped memory for tpu_custom_call.1']
    #allocation4 [shape = 's32[1]{0}', space=sflag, size = 0x4, scoped, tag = 'scoped memory for tpu_custom_call.1']
    #allocation5 [shape = 'u8[1048576]{0}', space=vmem, size = 0x100000, scoped, tag = 'input window, operand 1, single buffered']
    #allocation6 [shape = 's32[1]{0}', space=sflag, size = 0x4, scoped, tag = 'scoped memory for tpu_custom_call.1']
    #allocation7 [shape = 'u8[262144]{0}', space=vmem, size = 0x40000, scoped, tag = 'input window, operand 3, single buffered']
    #allocation8 [shape = 'u8[8192]{0}', space=vmem, size = 0x2000, scoped, tag = 'output window, operand 0, single buffered']
    %10 = vsyncpa [#allocation3], 0
    %11 = vsyncpa [#allocation6], 0
    %12 = vsyncpa [#allocation4], 0
    // Predicated region
    $region2: #{tpu_custom_call.1} parent=1 // pred_check
      _
    $region3: #{tpu_custom_call.1} parent=1 // pred_check_branch
      %14 = sbr.rel (0) target = $region5
    $region4: #{tpu_custom_call.1} parent=1 // pred_region
      %s16 = ssub.s32 1024, 1024
      %17 = vsyncadd [#allocation3], %s16
      %s19 = sshll.u32 [#allocation2], 4
      %s20 = int_to_ptr.vmem [resolvable:$true] %s19
      %22 = dma.hbm_to_vmem [thread:$0]  %s0, 1024, %s20, [#allocation3]
    $region5: #{tpu_custom_call.1} parent=1 // pred_fallthru
      _
    // Predicated region
    $region6: #{tpu_custom_call.1} parent=1 // pred_check
      _
    $region7: #{tpu_custom_call.1} parent=1 // pred_check_branch
      %24 = sbr.rel (0) target = $region9
    $region8: #{tpu_custom_call.1} parent=1 // pred_region
      %s26 = ssub.s32 32768, 32768
      %27 = vsyncadd [#allocation6], %s26
      %s28 = sshll.u32 [#allocation5], 4
      %s29 = int_to_ptr.vmem [resolvable:$true] %s28
      %34 = dma.hbm_to_vmem [thread:$0]  %s1, 32768, %s29, [#allocation6], 256, 256, 16
    $region9: #{tpu_custom_call.1} parent=1 // pred_fallthru
      _
    // Predicated region
    $region10: #{tpu_custom_call.1} parent=1 // pred_check
      _
    $region11: #{tpu_custom_call.1} parent=1 // pred_check_branch
      %36 = sbr.rel (0) target = $region13
    $region12: #{tpu_custom_call.1} parent=1 // pred_region
      _
    $region13: #{tpu_custom_call.1} parent=1 // pred_fallthru
      _
    // Predicated region
    $region14: #{tpu_custom_call.1} parent=1 // pred_check
      _
    $region15: #{tpu_custom_call.1} parent=1 // pred_check_branch
      %38 = sbr.rel (0) target = $region17
    $region16: #{tpu_custom_call.1} parent=1 // pred_region
      %s40 = ssub.s32 8192, 8192
      %41 = vsyncadd [#allocation6], %s40
      %s42 = sshll.u32 [#allocation7], 4
      %s43 = int_to_ptr.vmem [resolvable:$true] %s42
      %48 = dma.hbm_to_vmem [thread:$0]  %s3, 8192, %s43, [#allocation6], 256, 256, 16
    $region17: #{tpu_custom_call.1} parent=1 // pred_fallthru
      _
    // Predicated region
    $region18: #{tpu_custom_call.1} parent=1 // pred_check
      _
    $region19: #{tpu_custom_call.1} parent=1 // pred_check_branch
      %50 = sbr.rel (0) target = $region21
    $region20: #{tpu_custom_call.1} parent=1 // pred_region
      _
    $region21: #{tpu_custom_call.1} parent=1 // pred_fallthru
      _
    // Predicated region
    $region22: #{tpu_custom_call.1} parent=1 // pred_check
      _
    $region23: #{tpu_custom_call.1} parent=1 // pred_check_branch
      %52 = sbr.rel (0) target = $region25
    $region24: #{tpu_custom_call.1} parent=1 // pred_region
      %53 = dma.done [#allocation3], 1024
    $region25: #{tpu_custom_call.1} parent=1 // pred_fallthru
      _
    // Predicated region
    $region26: #{tpu_custom_call.1} parent=1 // pred_check
      _
    $region27: #{tpu_custom_call.1} parent=1 // pred_check_branch
      %55 = sbr.rel (0) target = $region29
    $region28: #{tpu_custom_call.1} parent=1 // pred_region
      %56 = dma.done [#allocation6], 32768
    $region29: #{tpu_custom_call.1} parent=1 // pred_fallthru
      _
    // Predicated region
    $region30: #{tpu_custom_call.1} parent=1 // pred_check
      _
    $region31: #{tpu_custom_call.1} parent=1 // pred_check_branch
      %58 = sbr.rel (0) target = $region33
    $region32: #{tpu_custom_call.1} parent=1 // pred_region
      %59 = dma.done [#allocation6], 8192
    $region33: #{tpu_custom_call.1} parent=1 // pred_fallthru
      _
    %v60 = vld [vmem:[#allocation2] sm:$0xff]
    %v61 = vld [vmem:[#allocation2 + $0x8] sm:$0xff]
    %v62 = vld [vmem:[#allocation2 + $0x10] sm:$0xff]
    %v63 = vld [vmem:[#allocation2 + $0x18] sm:$0xff]
    %v64 = vld [vmem:[#allocation2 + $0x20] sm:$0xff]
    %v65 = vld [vmem:[#allocation2 + $0x28] sm:$0xff]
    %v66 = vld [vmem:[#allocation2 + $0x30] sm:$0xff]
    %v67 = vld [vmem:[#allocation2 + $0x38] sm:$0xff]
    %v68 = vld [vmem:[#allocation5] sm:$0xff]
    %v69 = vld [vmem:[#allocation5 + $0x8] sm:$0xff]
    %v70 = vld [vmem:[#allocation5 + $0x10] sm:$0xff]
    %v71 = vld [vmem:[#allocation5 + $0x18] sm:$0xff]
    %v72 = vld [vmem:[#allocation5 + $0x20] sm:$0xff]
    %v73 = vld [vmem:[#allocation5 + $0x28] sm:$0xff]
    %v74 = vld [vmem:[#allocation5 + $0x30] sm:$0xff]
    %v75 = vld [vmem:[#allocation5 + $0x38] sm:$0xff]
    %v76 = vld [vmem:[#allocation5 + $0x40] sm:$0xff]
    %v77 = vld [vmem:[#allocation5 + $0x48] sm:$0xff]
    %v78 = vld [vmem:[#allocation5 + $0x50] sm:$0xff]
    %v79 = vld [vmem:[#allocation5 + $0x58] sm:$0xff]
    %v80 = vld [vmem:[#allocation5 + $0x60] sm:$0xff]
    %v81 = vld [vmem:[#allocation5 + $0x68] sm:$0xff]
    %v82 = vld [vmem:[#allocation5 + $0x70] sm:$0xff]
    %v83 = vld [vmem:[#allocation5 + $0x78] sm:$0xff]
    %v84 = vld [vmem:[#allocation5 + $0x80] sm:$0xff]
    %v85 = vld [vmem:[#allocation5 + $0x88] sm:$0xff]
    %v86 = vld [vmem:[#allocation5 + $0x90] sm:$0xff]
    %v87 = vld [vmem:[#allocation5 + $0x98] sm:$0xff]
    %v88 = vld [vmem:[#allocation5 + $0xa0] sm:$0xff]
    %v89 = vld [vmem:[#allocation5 + $0xa8] sm:$0xff]
    %v90 = vld [vmem:[#allocation5 + $0xb0] sm:$0xff]
    %v91 = vld [vmem:[#allocation5 + $0xb8] sm:$0xff]
    %v92 = vld [vmem:[#allocation5 + $0xc0] sm:$0xff]
    %v93 = vld [vmem:[#allocation5 + $0xc8] sm:$0xff]
    %v94 = vld [vmem:[#allocation5 + $0xd0] sm:$0xff]
    %v95 = vld [vmem:[#allocation5 + $0xd8] sm:$0xff]
    %v96 = vld [vmem:[#allocation5 + $0xe0] sm:$0xff]
    %v97 = vld [vmem:[#allocation5 + $0xe8] sm:$0xff]
    %v98 = vld [vmem:[#allocation5 + $0xf0] sm:$0xff]
    %v99 = vld [vmem:[#allocation5 + $0xf8] sm:$0xff]
    %v100 = vld [vmem:[#allocation5 + $0x100] sm:$0xff]
    %v101 = vld [vmem:[#allocation5 + $0x108] sm:$0xff]
    %v102 = vld [vmem:[#allocation5 + $0x110] sm:$0xff]
    %v103 = vld [vmem:[#allocation5 + $0x118] sm:$0xff]
    %v104 = vld [vmem:[#allocation5 + $0x120] sm:$0xff]
    %v105 = vld [vmem:[#allocation5 + $0x128] sm:$0xff]
    %v106 = vld [vmem:[#allocation5 + $0x130] sm:$0xff]
    %v107 = vld [vmem:[#allocation5 + $0x138] sm:$0xff]
    %v108 = vld [vmem:[#allocation5 + $0x140] sm:$0xff]
    %v109 = vld [vmem:[#allocation5 + $0x148] sm:$0xff]
    %v110 = vld [vmem:[#allocation5 + $0x150] sm:$0xff]
    %v111 = vld [vmem:[#allocation5 + $0x158] sm:$0xff]
    %v112 = vld [vmem:[#allocation5 + $0x160] sm:$0xff]
    %v113 = vld [vmem:[#allocation5 + $0x168] sm:$0xff]
    %v114 = vld [vmem:[#allocation5 + $0x170] sm:$0xff]
    %v115 = vld [vmem:[#allocation5 + $0x178] sm:$0xff]
    %v116 = vld [vmem:[#allocation5 + $0x180] sm:$0xff]
    %v117 = vld [vmem:[#allocation5 + $0x188] sm:$0xff]
    %v118 = vld [vmem:[#allocation5 + $0x190] sm:$0xff]
    %v119 = vld [vmem:[#allocation5 + $0x198] sm:$0xff]
    %v120 = vld [vmem:[#allocation5 + $0x1a0] sm:$0xff]
    %v121 = vld [vmem:[#allocation5 + $0x1a8] sm:$0xff]
    %v122 = vld [vmem:[#allocation5 + $0x1b0] sm:$0xff]
    %v123 = vld [vmem:[#allocation5 + $0x1b8] sm:$0xff]
    %v124 = vld [vmem:[#allocation5 + $0x1c0] sm:$0xff]
    %v125 = vld [vmem:[#allocation5 + $0x1c8] sm:$0xff]
    %v126 = vld [vmem:[#allocation5 + $0x1d0] sm:$0xff]
    %v127 = vld [vmem:[#allocation5 + $0x1d8] sm:$0xff]
    %v128 = vld [vmem:[#allocation5 + $0x1e0] sm:$0xff]
    %v129 = vld [vmem:[#allocation5 + $0x1e8] sm:$0xff]
    %v130 = vld [vmem:[#allocation5 + $0x1f0] sm:$0xff]
    %v131 = vld [vmem:[#allocation5 + $0x1f8] sm:$0xff]
    %v132 = vld [vmem:[#allocation5 + $0x200] sm:$0xff]
    %v133 = vld [vmem:[#allocation5 + $0x208] sm:$0xff]
    %v134 = vld [vmem:[#allocation5 + $0x210] sm:$0xff]
    %v135 = vld [vmem:[#allocation5 + $0x218] sm:$0xff]
    %v136 = vld [vmem:[#allocation5 + $0x220] sm:$0xff]
    %v137 = vld [vmem:[#allocation5 + $0x228] sm:$0xff]
    %v138 = vld [vmem:[#allocation5 + $0x230] sm:$0xff]
    %v139 = vld [vmem:[#allocation5 + $0x238] sm:$0xff]
    %v140 = vld [vmem:[#allocation5 + $0x240] sm:$0xff]
    %v141 = vld [vmem:[#allocation5 + $0x248] sm:$0xff]
    %v142 = vld [vmem:[#allocation5 + $0x250] sm:$0xff]
    %v143 = vld [vmem:[#allocation5 + $0x258] sm:$0xff]
    %v144 = vld [vmem:[#allocation5 + $0x260] sm:$0xff]
    %v145 = vld [vmem:[#allocation5 + $0x268] sm:$0xff]
    %v146 = vld [vmem:[#allocation5 + $0x270] sm:$0xff]
    %v147 = vld [vmem:[#allocation5 + $0x278] sm:$0xff]
    %v148 = vld [vmem:[#allocation5 + $0x280] sm:$0xff]
    %v149 = vld [vmem:[#allocation5 + $0x288] sm:$0xff]
    %v150 = vld [vmem:[#allocation5 + $0x290] sm:$0xff]
    %v151 = vld [vmem:[#allocation5 + $0x298] sm:$0xff]
    %v152 = vld [vmem:[#allocation5 + $0x2a0] sm:$0xff]
    %v153 = vld [vmem:[#allocation5 + $0x2a8] sm:$0xff]
    %v154 = vld [vmem:[#allocation5 + $0x2b0] sm:$0xff]
    %v155 = vld [vmem:[#allocation5 + $0x2b8] sm:$0xff]
    %v156 = vld [vmem:[#allocation5 + $0x2c0] sm:$0xff]
    %v157 = vld [vmem:[#allocation5 + $0x2c8] sm:$0xff]
    %v158 = vld [vmem:[#allocation5 + $0x2d0] sm:$0xff]
    %v159 = vld [vmem:[#allocation5 + $0x2d8] sm:$0xff]
    %v160 = vld [vmem:[#allocation5 + $0x2e0] sm:$0xff]
    %v161 = vld [vmem:[#allocation5 + $0x2e8] sm:$0xff]
    %v162 = vld [vmem:[#allocation5 + $0x2f0] sm:$0xff]
    %v163 = vld [vmem:[#allocation5 + $0x2f8] sm:$0xff]
    %v164 = vld [vmem:[#allocation5 + $0x300] sm:$0xff]
    %v165 = vld [vmem:[#allocation5 + $0x308] sm:$0xff]
    %v166 = vld [vmem:[#allocation5 + $0x310] sm:$0xff]
    %v167 = vld [vmem:[#allocation5 + $0x318] sm:$0xff]
    %v168 = vld [vmem:[#allocation5 + $0x320] sm:$0xff]
    %v169 = vld [vmem:[#allocation5 + $0x328] sm:$0xff]
    %v170 = vld [vmem:[#allocation5 + $0x330] sm:$0xff]
    %v171 = vld [vmem:[#allocation5 + $0x338] sm:$0xff]
    %v172 = vld [vmem:[#allocation5 + $0x340] sm:$0xff]
    %v173 = vld [vmem:[#allocation5 + $0x348] sm:$0xff]
    %v174 = vld [vmem:[#allocation5 + $0x350] sm:$0xff]
    %v175 = vld [vmem:[#allocation5 + $0x358] sm:$0xff]
    %v176 = vld [vmem:[#allocation5 + $0x360] sm:$0xff]
    %v177 = vld [vmem:[#allocation5 + $0x368] sm:$0xff]
    %v178 = vld [vmem:[#allocation5 + $0x370] sm:$0xff]
    %v179 = vld [vmem:[#allocation5 + $0x378] sm:$0xff]
    %v180 = vld [vmem:[#allocation5 + $0x380] sm:$0xff]
    %v181 = vld [vmem:[#allocation5 + $0x388] sm:$0xff]
    %v182 = vld [vmem:[#allocation5 + $0x390] sm:$0xff]
    %v183 = vld [vmem:[#allocation5 + $0x398] sm:$0xff]
    %v184 = vld [vmem:[#allocation5 + $0x3a0] sm:$0xff]
    %v185 = vld [vmem:[#allocation5 + $0x3a8] sm:$0xff]
    %v186 = vld [vmem:[#allocation5 + $0x3b0] sm:$0xff]
    %v187 = vld [vmem:[#allocation5 + $0x3b8] sm:$0xff]
    %v188 = vld [vmem:[#allocation5 + $0x3c0] sm:$0xff]
    %v189 = vld [vmem:[#allocation5 + $0x3c8] sm:$0xff]
    %v190 = vld [vmem:[#allocation5 + $0x3d0] sm:$0xff]
    %v191 = vld [vmem:[#allocation5 + $0x3d8] sm:$0xff]
    %v192 = vld [vmem:[#allocation5 + $0x3e0] sm:$0xff]
    %v193 = vld [vmem:[#allocation5 + $0x3e8] sm:$0xff]
    %v194 = vld [vmem:[#allocation5 + $0x3f0] sm:$0xff]
    %v195 = vld [vmem:[#allocation5 + $0x3f8] sm:$0xff]
    %v196 = vld [vmem:[#allocation5 + $0x400] sm:$0xff]
    %v197 = vld [vmem:[#allocation5 + $0x408] sm:$0xff]
    %v198 = vld [vmem:[#allocation5 + $0x410] sm:$0xff]
    %v199 = vld [vmem:[#allocation5 + $0x418] sm:$0xff]
    %v200 = vld [vmem:[#allocation5 + $0x420] sm:$0xff]
    %v201 = vld [vmem:[#allocation5 + $0x428] sm:$0xff]
    %v202 = vld [vmem:[#allocation5 + $0x430] sm:$0xff]
    %v203 = vld [vmem:[#allocation5 + $0x438] sm:$0xff]
    %v204 = vld [vmem:[#allocation5 + $0x440] sm:$0xff]
    %v205 = vld [vmem:[#allocation5 + $0x448] sm:$0xff]
    %v206 = vld [vmem:[#allocation5 + $0x450] sm:$0xff]
    %v207 = vld [vmem:[#allocation5 + $0x458] sm:$0xff]
    %v208 = vld [vmem:[#allocation5 + $0x460] sm:$0xff]
    %v209 = vld [vmem:[#allocation5 + $0x468] sm:$0xff]
    %v210 = vld [vmem:[#allocation5 + $0x470] sm:$0xff]
    %v211 = vld [vmem:[#allocation5 + $0x478] sm:$0xff]
    %v212 = vld [vmem:[#allocation5 + $0x480] sm:$0xff]
    %v213 = vld [vmem:[#allocation5 + $0x488] sm:$0xff]
    %v214 = vld [vmem:[#allocation5 + $0x490] sm:$0xff]
    %v215 = vld [vmem:[#allocation5 + $0x498] sm:$0xff]
    %v216 = vld [vmem:[#allocation5 + $0x4a0] sm:$0xff]
    %v217 = vld [vmem:[#allocation5 + $0x4a8] sm:$0xff]
    %v218 = vld [vmem:[#allocation5 + $0x4b0] sm:$0xff]
    %v219 = vld [vmem:[#allocation5 + $0x4b8] sm:$0xff]
    %v220 = vld [vmem:[#allocation5 + $0x4c0] sm:$0xff]
    %v221 = vld [vmem:[#allocation5 + $0x4c8] sm:$0xff]
    %v222 = vld [vmem:[#allocation5 + $0x4d0] sm:$0xff]
    %v223 = vld [vmem:[#allocation5 + $0x4d8] sm:$0xff]
    %v224 = vld [vmem:[#allocation5 + $0x4e0] sm:$0xff]
    %v225 = vld [vmem:[#allocation5 + $0x4e8] sm:$0xff]
    %v226 = vld [vmem:[#allocation5 + $0x4f0] sm:$0xff]
    %v227 = vld [vmem:[#allocation5 + $0x4f8] sm:$0xff]
    %v228 = vld [vmem:[#allocation5 + $0x500] sm:$0xff]
    %v229 = vld [vmem:[#allocation5 + $0x508] sm:$0xff]
    %v230 = vld [vmem:[#allocation5 + $0x510] sm:$0xff]
    %v231 = vld [vmem:[#allocation5 + $0x518] sm:$0xff]
    %v232 = vld [vmem:[#allocation5 + $0x520] sm:$0xff]
    %v233 = vld [vmem:[#allocation5 + $0x528] sm:$0xff]
    %v234 = vld [vmem:[#allocation5 + $0x530] sm:$0xff]
    %v235 = vld [vmem:[#allocation5 + $0x538] sm:$0xff]
    %v236 = vld [vmem:[#allocation5 + $0x540] sm:$0xff]
    %v237 = vld [vmem:[#allocation5 + $0x548] sm:$0xff]
    %v238 = vld [vmem:[#allocation5 + $0x550] sm:$0xff]
    %v239 = vld [vmem:[#allocation5 + $0x558] sm:$0xff]
    %v240 = vld [vmem:[#allocation5 + $0x560] sm:$0xff]
    %v241 = vld [vmem:[#allocation5 + $0x568] sm:$0xff]
    %v242 = vld [vmem:[#allocation5 + $0x570] sm:$0xff]
    %v243 = vld [vmem:[#allocation5 + $0x578] sm:$0xff]
    %v244 = vld [vmem:[#allocation5 + $0x580] sm:$0xff]
    %v245 = vld [vmem:[#allocation5 + $0x588] sm:$0xff]
    %v246 = vld [vmem:[#allocation5 + $0x590] sm:$0xff]
    %v247 = vld [vmem:[#allocation5 + $0x598] sm:$0xff]
    %v248 = vld [vmem:[#allocation5 + $0x5a0] sm:$0xff]
    %v249 = vld [vmem:[#allocation5 + $0x5a8] sm:$0xff]
    %v250 = vld [vmem:[#allocation5 + $0x5b0] sm:$0xff]
    %v251 = vld [vmem:[#allocation5 + $0x5b8] sm:$0xff]
    %v252 = vld [vmem:[#allocation5 + $0x5c0] sm:$0xff]
    %v253 = vld [vmem:[#allocation5 + $0x5c8] sm:$0xff]
    %v254 = vld [vmem:[#allocation5 + $0x5d0] sm:$0xff]
    %v255 = vld [vmem:[#allocation5 + $0x5d8] sm:$0xff]
    %v256 = vld [vmem:[#allocation5 + $0x5e0] sm:$0xff]
    %v257 = vld [vmem:[#allocation5 + $0x5e8] sm:$0xff]
    %v258 = vld [vmem:[#allocation5 + $0x5f0] sm:$0xff]
    %v259 = vld [vmem:[#allocation5 + $0x5f8] sm:$0xff]
    %v260 = vld [vmem:[#allocation5 + $0x600] sm:$0xff]
    %v261 = vld [vmem:[#allocation5 + $0x608] sm:$0xff]
    %v262 = vld [vmem:[#allocation5 + $0x610] sm:$0xff]
    %v263 = vld [vmem:[#allocation5 + $0x618] sm:$0xff]
    %v264 = vld [vmem:[#allocation5 + $0x620] sm:$0xff]
    %v265 = vld [vmem:[#allocation5 + $0x628] sm:$0xff]
    %v266 = vld [vmem:[#allocation5 + $0x630] sm:$0xff]
    %v267 = vld [vmem:[#allocation5 + $0x638] sm:$0xff]
    %v268 = vld [vmem:[#allocation5 + $0x640] sm:$0xff]
    %v269 = vld [vmem:[#allocation5 + $0x648] sm:$0xff]
    %v270 = vld [vmem:[#allocation5 + $0x650] sm:$0xff]
    %v271 = vld [vmem:[#allocation5 + $0x658] sm:$0xff]
    %v272 = vld [vmem:[#allocation5 + $0x660] sm:$0xff]
    %v273 = vld [vmem:[#allocation5 + $0x668] sm:$0xff]
    %v274 = vld [vmem:[#allocation5 + $0x670] sm:$0xff]
    %v275 = vld [vmem:[#allocation5 + $0x678] sm:$0xff]
    %v276 = vld [vmem:[#allocation5 + $0x680] sm:$0xff]
    %v277 = vld [vmem:[#allocation5 + $0x688] sm:$0xff]
    %v278 = vld [vmem:[#allocation5 + $0x690] sm:$0xff]
    %v279 = vld [vmem:[#allocation5 + $0x698] sm:$0xff]
    %v280 = vld [vmem:[#allocation5 + $0x6a0] sm:$0xff]
    %v281 = vld [vmem:[#allocation5 + $0x6a8] sm:$0xff]
    %v282 = vld [vmem:[#allocation5 + $0x6b0] sm:$0xff]
    %v283 = vld [vmem:[#allocation5 + $0x6b8] sm:$0xff]
    %v284 = vld [vmem:[#allocation5 + $0x6c0] sm:$0xff]
    %v285 = vld [vmem:[#allocation5 + $0x6c8] sm:$0xff]
    %v286 = vld [vmem:[#allocation5 + $0x6d0] sm:$0xff]
    %v287 = vld [vmem:[#allocation5 + $0x6d8] sm:$0xff]
    %v288 = vld [vmem:[#allocation5 + $0x6e0] sm:$0xff]
    %v289 = vld [vmem:[#allocation5 + $0x6e8] sm:$0xff]
    %v290 = vld [vmem:[#allocation5 + $0x6f0] sm:$0xff]
    %v291 = vld [vmem:[#allocation5 + $0x6f8] sm:$0xff]
    %v292 = vld [vmem:[#allocation5 + $0x700] sm:$0xff]
    %v293 = vld [vmem:[#allocation5 + $0x708] sm:$0xff]
    %v294 = vld [vmem:[#allocation5 + $0x710] sm:$0xff]
    %v295 = vld [vmem:[#allocation5 + $0x718] sm:$0xff]
    %v296 = vld [vmem:[#allocation5 + $0x720] sm:$0xff]
    %v297 = vld [vmem:[#allocation5 + $0x728] sm:$0xff]
    %v298 = vld [vmem:[#allocation5 + $0x730] sm:$0xff]
    %v299 = vld [vmem:[#allocation5 + $0x738] sm:$0xff]
    %v300 = vld [vmem:[#allocation5 + $0x740] sm:$0xff]
    %v301 = vld [vmem:[#allocation5 + $0x748] sm:$0xff]
    %v302 = vld [vmem:[#allocation5 + $0x750] sm:$0xff]
    %v303 = vld [vmem:[#allocation5 + $0x758] sm:$0xff]
    %v304 = vld [vmem:[#allocation5 + $0x760] sm:$0xff]
    %v305 = vld [vmem:[#allocation5 + $0x768] sm:$0xff]
    %v306 = vld [vmem:[#allocation5 + $0x770] sm:$0xff]
    %v307 = vld [vmem:[#allocation5 + $0x778] sm:$0xff]
    %v308 = vld [vmem:[#allocation5 + $0x780] sm:$0xff]
    %v309 = vld [vmem:[#allocation5 + $0x788] sm:$0xff]
    %v310 = vld [vmem:[#allocation5 + $0x790] sm:$0xff]
    %v311 = vld [vmem:[#allocation5 + $0x798] sm:$0xff]
    %v312 = vld [vmem:[#allocation5 + $0x7a0] sm:$0xff]
    %v313 = vld [vmem:[#allocation5 + $0x7a8] sm:$0xff]
    %v314 = vld [vmem:[#allocation5 + $0x7b0] sm:$0xff]
    %v315 = vld [vmem:[#allocation5 + $0x7b8] sm:$0xff]
    %v316 = vld [vmem:[#allocation5 + $0x7c0] sm:$0xff]
    %v317 = vld [vmem:[#allocation5 + $0x7c8] sm:$0xff]
    %v318 = vld [vmem:[#allocation5 + $0x7d0] sm:$0xff]
    %v319 = vld [vmem:[#allocation5 + $0x7d8] sm:$0xff]
    %v320 = vld [vmem:[#allocation5 + $0x7e0] sm:$0xff]
    %v321 = vld [vmem:[#allocation5 + $0x7e8] sm:$0xff]
    %v322 = vld [vmem:[#allocation5 + $0x7f0] sm:$0xff]
    %v323 = vld [vmem:[#allocation5 + $0x7f8] sm:$0xff]
    %v324 = vld [vmem:[%s2] sm:$0x3]
    %v326 = vlaneseq
    %v327 = vshrl.u32 %v326, 7
    %v328 = vsub.s32 0, %v327
    %v329 = vrot.slane %v324, %v328
    %v330 = vlaneseq
    %v331 = vshrl.u32 %v330, 7
    %v332 = vsub.s32 1, %v331
    %v333 = vrot.slane %v324, %v332
    %336 = vmatprep.subr.mxu0 %v99
    %337 = vmatpush1.msra.mxu0 %v98
    %338 = vmatprep.subr.mxu0 %v97
    %339 = vmatpush1.msra.mxu0 %v96
    %340 = vmatprep.subr.mxu0 %v95
    %341 = vmatpush1.msra.mxu0 %v94
    %342 = vmatprep.subr.mxu0 %v93
    %343 = vmatpush1.msra.mxu0 %v92
    %344 = vmatprep.subr.mxu0 %v91
    %345 = vmatpush1.msra.mxu0 %v90
    %346 = vmatprep.subr.mxu0 %v89
    %347 = vmatpush1.msra.mxu0 %v88
    %348 = vmatprep.subr.mxu0 %v87
    %349 = vmatpush1.msra.mxu0 %v86
    %350 = vmatprep.subr.mxu0 %v85
    %351 = vmatpush1.msra.mxu0 %v84
    %352 = vmatprep.subr.mxu0 %v83
    %353 = vmatpush1.msra.mxu0 %v82
    %354 = vmatprep.subr.mxu0 %v81
    %355 = vmatpush1.msra.mxu0 %v80
    %356 = vmatprep.subr.mxu0 %v79
    %357 = vmatpush1.msra.mxu0 %v78
    %358 = vmatprep.subr.mxu0 %v77
    %359 = vmatpush1.msra.mxu0 %v76
    %360 = vmatprep.subr.mxu0 %v75
    %361 = vmatpush1.msra.mxu0 %v74
    %362 = vmatprep.subr.mxu0 %v73
    %363 = vmatpush1.msra.mxu0 %v72
    %364 = vmatprep.subr.mxu0 %v71
    %365 = vmatpush1.msra.mxu0 %v70
    %366 = vmatprep.subr.mxu0 %v69
    %367 = vmatpush1.msra.mxu0 %v68
    %368 = vmatprep.subr.mxu0 %v131
    %369 = vmatpush2.msra.mxu0 %v130
    %370 = vmatprep.subr.mxu0 %v129
    %371 = vmatpush2.msra.mxu0 %v128
    %372 = vmatprep.subr.mxu0 %v127
    %373 = vmatpush2.msra.mxu0 %v126
    %374 = vmatprep.subr.mxu0 %v125
    %375 = vmatpush2.msra.mxu0 %v124
    %376 = vmatprep.subr.mxu0 %v123
    %377 = vmatpush2.msra.mxu0 %v122
    %378 = vmatprep.subr.mxu0 %v121
    %379 = vmatpush2.msra.mxu0 %v120
    %380 = vmatprep.subr.mxu0 %v119
    %381 = vmatpush2.msra.mxu0 %v118
    %382 = vmatprep.subr.mxu0 %v117
    %383 = vmatpush2.msra.mxu0 %v116
    %384 = vmatprep.subr.mxu0 %v115
    %385 = vmatpush2.msra.mxu0 %v114
    %386 = vmatprep.subr.mxu0 %v113
    %387 = vmatpush2.msra.mxu0 %v112
    %388 = vmatprep.subr.mxu0 %v111
    %389 = vmatpush2.msra.mxu0 %v110
    %390 = vmatprep.subr.mxu0 %v109
    %391 = vmatpush2.msra.mxu0 %v108
    %392 = vmatprep.subr.mxu0 %v107
    %393 = vmatpush2.msra.mxu0 %v106
    %394 = vmatprep.subr.mxu0 %v105
    %395 = vmatpush2.msra.mxu0 %v104
    %396 = vmatprep.subr.mxu0 %v103
    %397 = vmatpush2.msra.mxu0 %v102
    %398 = vmatprep.subr.mxu0 %v101
    %399 = vmatpush2.msra.mxu0 %v100
    %400 = vmatprep.mubr.f32.mxu0 %v61
    %401 = vmatmul.mubr.f32.gmra.mxu0 %v60
    %v402 = vpop.f32.mrf.mxu0
    %v403 = vadd.f32 %v329, %v402
    %v404 = vpop.f32.mrf.mxu0
    %v405 = vadd.f32 %v333, %v404
    %406 = vdwg.mxu0
    %407 = vmatprep.subr.mxu0 %v163
    %408 = vmatpush1.msra.mxu0 %v162
    %409 = vmatprep.subr.mxu0 %v161
    %410 = vmatpush1.msra.mxu0 %v160
    %411 = vmatprep.subr.mxu0 %v159
    %412 = vmatpush1.msra.mxu0 %v158
    %413 = vmatprep.subr.mxu0 %v157
    %414 = vmatpush1.msra.mxu0 %v156
    %415 = vmatprep.subr.mxu0 %v155
    %416 = vmatpush1.msra.mxu0 %v154
    %417 = vmatprep.subr.mxu0 %v153
    %418 = vmatpush1.msra.mxu0 %v152
    %419 = vmatprep.subr.mxu0 %v151
    %420 = vmatpush1.msra.mxu0 %v150
    %421 = vmatprep.subr.mxu0 %v149
    %422 = vmatpush1.msra.mxu0 %v148
    %423 = vmatprep.subr.mxu0 %v147
    %424 = vmatpush1.msra.mxu0 %v146
    %425 = vmatprep.subr.mxu0 %v145
    %426 = vmatpush1.msra.mxu0 %v144
    %427 = vmatprep.subr.mxu0 %v143
    %428 = vmatpush1.msra.mxu0 %v142
    %429 = vmatprep.subr.mxu0 %v141
    %430 = vmatpush1.msra.mxu0 %v140
    %431 = vmatprep.subr.mxu0 %v139
    %432 = vmatpush1.msra.mxu0 %v138
    %433 = vmatprep.subr.mxu0 %v137
    %434 = vmatpush1.msra.mxu0 %v136
    %435 = vmatprep.subr.mxu0 %v135
    %436 = vmatpush1.msra.mxu0 %v134
    %437 = vmatprep.subr.mxu0 %v133
    %438 = vmatpush1.msra.mxu0 %v132
    %439 = vmatprep.subr.mxu0 %v195
    %440 = vmatpush2.msra.mxu0 %v194
    %441 = vmatprep.subr.mxu0 %v193
    %442 = vmatpush2.msra.mxu0 %v192
    %443 = vmatprep.subr.mxu0 %v191
    %444 = vmatpush2.msra.mxu0 %v190
    %445 = vmatprep.subr.mxu0 %v189
    %446 = vmatpush2.msra.mxu0 %v188
    %447 = vmatprep.subr.mxu0 %v187
    %448 = vmatpush2.msra.mxu0 %v186
    %449 = vmatprep.subr.mxu0 %v185
    %450 = vmatpush2.msra.mxu0 %v184
    %451 = vmatprep.subr.mxu0 %v183
    %452 = vmatpush2.msra.mxu0 %v182
    %453 = vmatprep.subr.mxu0 %v181
    %454 = vmatpush2.msra.mxu0 %v180
    %455 = vmatprep.subr.mxu0 %v179
    %456 = vmatpush2.msra.mxu0 %v178
    %457 = vmatprep.subr.mxu0 %v177
    %458 = vmatpush2.msra.mxu0 %v176
    %459 = vmatprep.subr.mxu0 %v175
    %460 = vmatpush2.msra.mxu0 %v174
    %461 = vmatprep.subr.mxu0 %v173
    %462 = vmatpush2.msra.mxu0 %v172
    %463 = vmatprep.subr.mxu0 %v171
    %464 = vmatpush2.msra.mxu0 %v170
    %465 = vmatprep.subr.mxu0 %v169
    %466 = vmatpush2.msra.mxu0 %v168
    %467 = vmatprep.subr.mxu0 %v167
    %468 = vmatpush2.msra.mxu0 %v166
    %469 = vmatprep.subr.mxu0 %v165
    %470 = vmatpush2.msra.mxu0 %v164
    %471 = vmatprep.mubr.f32.mxu0 %v63
    %472 = vmatmul.mubr.f32.gmra.mxu0 %v62
    %v473 = vpop.f32.mrf.mxu0
    %v474 = vadd.f32 %v403, %v473
    %v475 = vpop.f32.mrf.mxu0
    %v476 = vadd.f32 %v405, %v475
    %477 = vdwg.mxu0
    %478 = vmatprep.subr.mxu0 %v227
    %479 = vmatpush1.msra.mxu0 %v226
    %480 = vmatprep.subr.mxu0 %v225
    %481 = vmatpush1.msra.mxu0 %v224
    %482 = vmatprep.subr.mxu0 %v223
    %483 = vmatpush1.msra.mxu0 %v222
    %484 = vmatprep.subr.mxu0 %v221
    %485 = vmatpush1.msra.mxu0 %v220
    %486 = vmatprep.subr.mxu0 %v219
    %487 = vmatpush1.msra.mxu0 %v218
    %488 = vmatprep.subr.mxu0 %v217
    %489 = vmatpush1.msra.mxu0 %v216
    %490 = vmatprep.subr.mxu0 %v215
    %491 = vmatpush1.msra.mxu0 %v214
    %492 = vmatprep.subr.mxu0 %v213
    %493 = vmatpush1.msra.mxu0 %v212
    %494 = vmatprep.subr.mxu0 %v211
    %495 = vmatpush1.msra.mxu0 %v210
    %496 = vmatprep.subr.mxu0 %v209
    %497 = vmatpush1.msra.mxu0 %v208
    %498 = vmatprep.subr.mxu0 %v207
    %499 = vmatpush1.msra.mxu0 %v206
    %500 = vmatprep.subr.mxu0 %v205
    %501 = vmatpush1.msra.mxu0 %v204
    %502 = vmatprep.subr.mxu0 %v203
    %503 = vmatpush1.msra.mxu0 %v202
    %504 = vmatprep.subr.mxu0 %v201
    %505 = vmatpush1.msra.mxu0 %v200
    %506 = vmatprep.subr.mxu0 %v199
    %507 = vmatpush1.msra.mxu0 %v198
    %508 = vmatprep.subr.mxu0 %v197
    %509 = vmatpush1.msra.mxu0 %v196
    %510 = vmatprep.subr.mxu0 %v259
    %511 = vmatpush2.msra.mxu0 %v258
    %512 = vmatprep.subr.mxu0 %v257
    %513 = vmatpush2.msra.mxu0 %v256
    %514 = vmatprep.subr.mxu0 %v255
    %515 = vmatpush2.msra.mxu0 %v254
    %516 = vmatprep.subr.mxu0 %v253
    %517 = vmatpush2.msra.mxu0 %v252
    %518 = vmatprep.subr.mxu0 %v251
    %519 = vmatpush2.msra.mxu0 %v250
    %520 = vmatprep.subr.mxu0 %v249
    %521 = vmatpush2.msra.mxu0 %v248
    %522 = vmatprep.subr.mxu0 %v247
    %523 = vmatpush2.msra.mxu0 %v246
    %524 = vmatprep.subr.mxu0 %v245
    %525 = vmatpush2.msra.mxu0 %v244
    %526 = vmatprep.subr.mxu0 %v243
    %527 = vmatpush2.msra.mxu0 %v242
    %528 = vmatprep.subr.mxu0 %v241
    %529 = vmatpush2.msra.mxu0 %v240
    %530 = vmatprep.subr.mxu0 %v239
    %531 = vmatpush2.msra.mxu0 %v238
    %532 = vmatprep.subr.mxu0 %v237
    %533 = vmatpush2.msra.mxu0 %v236
    %534 = vmatprep.subr.mxu0 %v235
    %535 = vmatpush2.msra.mxu0 %v234
    %536 = vmatprep.subr.mxu0 %v233
    %537 = vmatpush2.msra.mxu0 %v232
    %538 = vmatprep.subr.mxu0 %v231
    %539 = vmatpush2.msra.mxu0 %v230
    %540 = vmatprep.subr.mxu0 %v229
    %541 = vmatpush2.msra.mxu0 %v228
    %542 = vmatprep.mubr.f32.mxu0 %v65
    %543 = vmatmul.mubr.f32.gmra.mxu0 %v64
    %v544 = vpop.f32.mrf.mxu0
    %v545 = vadd.f32 %v474, %v544
    %v546 = vpop.f32.mrf.mxu0
    %v547 = vadd.f32 %v476, %v546
    %548 = vdwg.mxu0
    %549 = vmatprep.subr.mxu0 %v291
    %550 = vmatpush1.msra.mxu0 %v290
    %551 = vmatprep.subr.mxu0 %v289
    %552 = vmatpush1.msra.mxu0 %v288
    %553 = vmatprep.subr.mxu0 %v287
    %554 = vmatpush1.msra.mxu0 %v286
    %555 = vmatprep.subr.mxu0 %v285
    %556 = vmatpush1.msra.mxu0 %v284
    %557 = vmatprep.subr.mxu0 %v283
    %558 = vmatpush1.msra.mxu0 %v282
    %559 = vmatprep.subr.mxu0 %v281
    %560 = vmatpush1.msra.mxu0 %v280
    %561 = vmatprep.subr.mxu0 %v279
    %562 = vmatpush1.msra.mxu0 %v278
    %563 = vmatprep.subr.mxu0 %v277
    %564 = vmatpush1.msra.mxu0 %v276
    %565 = vmatprep.subr.mxu0 %v275
    %566 = vmatpush1.msra.mxu0 %v274
    %567 = vmatprep.subr.mxu0 %v273
    %568 = vmatpush1.msra.mxu0 %v272
    %569 = vmatprep.subr.mxu0 %v271
    %570 = vmatpush1.msra.mxu0 %v270
    %571 = vmatprep.subr.mxu0 %v269
    %572 = vmatpush1.msra.mxu0 %v268
    %573 = vmatprep.subr.mxu0 %v267
    %574 = vmatpush1.msra.mxu0 %v266
    %575 = vmatprep.subr.mxu0 %v265
    %576 = vmatpush1.msra.mxu0 %v264
    %577 = vmatprep.subr.mxu0 %v263
    %578 = vmatpush1.msra.mxu0 %v262
    %579 = vmatprep.subr.mxu0 %v261
    %580 = vmatpush1.msra.mxu0 %v260
    %581 = vmatprep.subr.mxu0 %v323
    %582 = vmatpush2.msra.mxu0 %v322
    %583 = vmatprep.subr.mxu0 %v321
    %584 = vmatpush2.msra.mxu0 %v320
    %585 = vmatprep.subr.mxu0 %v319
    %586 = vmatpush2.msra.mxu0 %v318
    %587 = vmatprep.subr.mxu0 %v317
    %588 = vmatpush2.msra.mxu0 %v316
    %589 = vmatprep.subr.mxu0 %v315
    %590 = vmatpush2.msra.mxu0 %v314
    %591 = vmatprep.subr.mxu0 %v313
    %592 = vmatpush2.msra.mxu0 %v312
    %593 = vmatprep.subr.mxu0 %v311
    %594 = vmatpush2.msra.mxu0 %v310
    %595 = vmatprep.subr.mxu0 %v309
    %596 = vmatpush2.msra.mxu0 %v308
    %597 = vmatprep.subr.mxu0 %v307
    %598 = vmatpush2.msra.mxu0 %v306
    %599 = vmatprep.subr.mxu0 %v305
    %600 = vmatpush2.msra.mxu0 %v304
    %601 = vmatprep.subr.mxu0 %v303
    %602 = vmatpush2.msra.mxu0 %v302
    %603 = vmatprep.subr.mxu0 %v301
    %604 = vmatpush2.msra.mxu0 %v300
    %605 = vmatprep.subr.mxu0 %v299
    %606 = vmatpush2.msra.mxu0 %v298
    %607 = vmatprep.subr.mxu0 %v297
    %608 = vmatpush2.msra.mxu0 %v296
    %609 = vmatprep.subr.mxu0 %v295
    %610 = vmatpush2.msra.mxu0 %v294
    %611 = vmatprep.subr.mxu0 %v293
    %612 = vmatpush2.msra.mxu0 %v292
    %613 = vmatprep.mubr.f32.mxu0 %v67
    %614 = vmatmul.mubr.f32.gmra.mxu0 %v66
    %v615 = vpop.f32.mrf.mxu0
    %v616 = vadd.f32 %v545, %v615
    %v617 = vpop.f32.mrf.mxu0
    %v618 = vadd.f32 %v547, %v617
    %619 = vdwg.mxu0
    %v620 = vld [vmem:[#allocation7] sm:$0xff]
    %v621 = vld [vmem:[#allocation7 + $0x8] sm:$0xff]
    %v622 = vld [vmem:[#allocation7 + $0x10] sm:$0xff]
    %v623 = vld [vmem:[#allocation7 + $0x18] sm:$0xff]
    %v624 = vld [vmem:[#allocation7 + $0x20] sm:$0xff]
    %v625 = vld [vmem:[#allocation7 + $0x28] sm:$0xff]
    %v626 = vld [vmem:[#allocation7 + $0x30] sm:$0xff]
    %v627 = vld [vmem:[#allocation7 + $0x38] sm:$0xff]
    %v628 = vld [vmem:[#allocation7 + $0x40] sm:$0xff]
    %v629 = vld [vmem:[#allocation7 + $0x48] sm:$0xff]
    %v630 = vld [vmem:[#allocation7 + $0x50] sm:$0xff]
    %v631 = vld [vmem:[#allocation7 + $0x58] sm:$0xff]
    %v632 = vld [vmem:[#allocation7 + $0x60] sm:$0xff]
    %v633 = vld [vmem:[#allocation7 + $0x68] sm:$0xff]
    %v634 = vld [vmem:[#allocation7 + $0x70] sm:$0xff]
    %v635 = vld [vmem:[#allocation7 + $0x78] sm:$0xff]
    %v636 = vld [vmem:[#allocation7 + $0x80] sm:$0xff]
    %v637 = vld [vmem:[#allocation7 + $0x88] sm:$0xff]
    %v638 = vld [vmem:[#allocation7 + $0x90] sm:$0xff]
    %v639 = vld [vmem:[#allocation7 + $0x98] sm:$0xff]
    %v640 = vld [vmem:[#allocation7 + $0xa0] sm:$0xff]
    %v641 = vld [vmem:[#allocation7 + $0xa8] sm:$0xff]
    %v642 = vld [vmem:[#allocation7 + $0xb0] sm:$0xff]
    %v643 = vld [vmem:[#allocation7 + $0xb8] sm:$0xff]
    %v644 = vld [vmem:[#allocation7 + $0xc0] sm:$0xff]
    %v645 = vld [vmem:[#allocation7 + $0xc8] sm:$0xff]
    %v646 = vld [vmem:[#allocation7 + $0xd0] sm:$0xff]
    %v647 = vld [vmem:[#allocation7 + $0xd8] sm:$0xff]
    %v648 = vld [vmem:[#allocation7 + $0xe0] sm:$0xff]
    %v649 = vld [vmem:[#allocation7 + $0xe8] sm:$0xff]
    %v650 = vld [vmem:[#allocation7 + $0xf0] sm:$0xff]
    %v651 = vld [vmem:[#allocation7 + $0xf8] sm:$0xff]
    %v652 = vld [vmem:[#allocation7 + $0x100] sm:$0xff]
    %v653 = vld [vmem:[#allocation7 + $0x108] sm:$0xff]
    %v654 = vld [vmem:[#allocation7 + $0x110] sm:$0xff]
    %v655 = vld [vmem:[#allocation7 + $0x118] sm:$0xff]
    %v656 = vld [vmem:[#allocation7 + $0x120] sm:$0xff]
    %v657 = vld [vmem:[#allocation7 + $0x128] sm:$0xff]
    %v658 = vld [vmem:[#allocation7 + $0x130] sm:$0xff]
    %v659 = vld [vmem:[#allocation7 + $0x138] sm:$0xff]
    %v660 = vld [vmem:[#allocation7 + $0x140] sm:$0xff]
    %v661 = vld [vmem:[#allocation7 + $0x148] sm:$0xff]
    %v662 = vld [vmem:[#allocation7 + $0x150] sm:$0xff]
    %v663 = vld [vmem:[#allocation7 + $0x158] sm:$0xff]
    %v664 = vld [vmem:[#allocation7 + $0x160] sm:$0xff]
    %v665 = vld [vmem:[#allocation7 + $0x168] sm:$0xff]
    %v666 = vld [vmem:[#allocation7 + $0x170] sm:$0xff]
    %v667 = vld [vmem:[#allocation7 + $0x178] sm:$0xff]
    %v668 = vld [vmem:[#allocation7 + $0x180] sm:$0xff]
    %v669 = vld [vmem:[#allocation7 + $0x188] sm:$0xff]
    %v670 = vld [vmem:[#allocation7 + $0x190] sm:$0xff]
    %v671 = vld [vmem:[#allocation7 + $0x198] sm:$0xff]
    %v672 = vld [vmem:[#allocation7 + $0x1a0] sm:$0xff]
    %v673 = vld [vmem:[#allocation7 + $0x1a8] sm:$0xff]
    %v674 = vld [vmem:[#allocation7 + $0x1b0] sm:$0xff]
    %v675 = vld [vmem:[#allocation7 + $0x1b8] sm:$0xff]
    %v676 = vld [vmem:[#allocation7 + $0x1c0] sm:$0xff]
    %v677 = vld [vmem:[#allocation7 + $0x1c8] sm:$0xff]
    %v678 = vld [vmem:[#allocation7 + $0x1d0] sm:$0xff]
    %v679 = vld [vmem:[#allocation7 + $0x1d8] sm:$0xff]
    %v680 = vld [vmem:[#allocation7 + $0x1e0] sm:$0xff]
    %v681 = vld [vmem:[#allocation7 + $0x1e8] sm:$0xff]
    %v682 = vld [vmem:[#allocation7 + $0x1f0] sm:$0xff]
    %v683 = vld [vmem:[#allocation7 + $0x1f8] sm:$0xff]
    %v684 = vld [vmem:[%s4] sm:$0x3]
    %v686 = vlaneseq
    %v687 = vshrl.u32 %v686, 7
    %v688 = vsub.s32 0, %v687
    %v689 = vrot.slane %v684, %v688
    %v690 = vlaneseq
    %v691 = vshrl.u32 %v690, 7
    %v692 = vsub.s32 1, %v691
    %v693 = vrot.slane %v684, %v692
    %696 = vmatprep.subr.mxu0 %v651
    %697 = vmatpush1.msra.mxu0 %v650
    %698 = vmatprep.subr.mxu0 %v649
    %699 = vmatpush1.msra.mxu0 %v648
    %700 = vmatprep.subr.mxu0 %v647
    %701 = vmatpush1.msra.mxu0 %v646
    %702 = vmatprep.subr.mxu0 %v645
    %703 = vmatpush1.msra.mxu0 %v644
    %704 = vmatprep.subr.mxu0 %v643
    %705 = vmatpush1.msra.mxu0 %v642
    %706 = vmatprep.subr.mxu0 %v641
    %707 = vmatpush1.msra.mxu0 %v640
    %708 = vmatprep.subr.mxu0 %v639
    %709 = vmatpush1.msra.mxu0 %v638
    %710 = vmatprep.subr.mxu0 %v637
    %711 = vmatpush1.msra.mxu0 %v636
    %712 = vmatprep.subr.mxu0 %v635
    %713 = vmatpush1.msra.mxu0 %v634
    %714 = vmatprep.subr.mxu0 %v633
    %715 = vmatpush1.msra.mxu0 %v632
    %716 = vmatprep.subr.mxu0 %v631
    %717 = vmatpush1.msra.mxu0 %v630
    %718 = vmatprep.subr.mxu0 %v629
    %719 = vmatpush1.msra.mxu0 %v628
    %720 = vmatprep.subr.mxu0 %v627
    %721 = vmatpush1.msra.mxu0 %v626
    %722 = vmatprep.subr.mxu0 %v625
    %723 = vmatpush1.msra.mxu0 %v624
    %724 = vmatprep.subr.mxu0 %v623
    %725 = vmatpush1.msra.mxu0 %v622
    %726 = vmatprep.subr.mxu0 %v621
    %727 = vmatpush1.msra.mxu0 %v620
    %728 = vmatprep.subr.mxu0 %v683
    %729 = vmatpush2.msra.mxu0 %v682
    %730 = vmatprep.subr.mxu0 %v681
    %731 = vmatpush2.msra.mxu0 %v680
    %732 = vmatprep.subr.mxu0 %v679
    %733 = vmatpush2.msra.mxu0 %v678
    %734 = vmatprep.subr.mxu0 %v677
    %735 = vmatpush2.msra.mxu0 %v676
    %736 = vmatprep.subr.mxu0 %v675
    %737 = vmatpush2.msra.mxu0 %v674
    %738 = vmatprep.subr.mxu0 %v673
    %739 = vmatpush2.msra.mxu0 %v672
    %740 = vmatprep.subr.mxu0 %v671
    %741 = vmatpush2.msra.mxu0 %v670
    %742 = vmatprep.subr.mxu0 %v669
    %743 = vmatpush2.msra.mxu0 %v668
    %744 = vmatprep.subr.mxu0 %v667
    %745 = vmatpush2.msra.mxu0 %v666
    %746 = vmatprep.subr.mxu0 %v665
    %747 = vmatpush2.msra.mxu0 %v664
    %748 = vmatprep.subr.mxu0 %v663
    %749 = vmatpush2.msra.mxu0 %v662
    %750 = vmatprep.subr.mxu0 %v661
    %751 = vmatpush2.msra.mxu0 %v660
    %752 = vmatprep.subr.mxu0 %v659
    %753 = vmatpush2.msra.mxu0 %v658
    %754 = vmatprep.subr.mxu0 %v657
    %755 = vmatpush2.msra.mxu0 %v656
    %756 = vmatprep.subr.mxu0 %v655
    %757 = vmatpush2.msra.mxu0 %v654
    %758 = vmatprep.subr.mxu0 %v653
    %759 = vmatpush2.msra.mxu0 %v652
    %760 = vmatprep.mubr.f32.mxu0 %v618
    %761 = vmatmul.mubr.f32.gmra.mxu0 %v616
    %v762 = vpop.f32.mrf.mxu0
    %v763 = vadd.f32 %v689, %v762
    %v764 = vpop.f32.mrf.mxu0
    %v765 = vadd.f32 %v693, %v764
    %766 = vdwg.mxu0
    %767 = vst [vmem:[#allocation8] sm:$0xff] %v763
    %768 = vst [vmem:[#allocation8 + $0x8] sm:$0xff] %v765
    // Predicated region
    $region34: #{tpu_custom_call.1} parent=1 // pred_check
      _
    $region35: #{tpu_custom_call.1} parent=1 // pred_check_branch
      %770 = sbr.rel (0) target = $region37
    $region36: #{tpu_custom_call.1} parent=1 // pred_region
      %s772 = ssub.s32 256, 256
      %773 = vsyncadd [#allocation4], %s772
      %s775 = sshll.u32 [#allocation8], 4
      %s776 = int_to_ptr.vmem [resolvable:$true] %s775
      %778 = dma.vmem_to_hbm [thread:$0]  %s776, 256, %s5, [#allocation4]
    $region37: #{tpu_custom_call.1} parent=1 // pred_fallthru
      _
    // Predicated region
    $region38: #{tpu_custom_call.1} parent=1 // pred_check
      _
    $region39: #{tpu_custom_call.1} parent=1 // pred_check_branch
      %780 = sbr.rel (0) target = $region41
    $region40: #{tpu_custom_call.1} parent=1 // pred_region
      %781 = dma.done [#allocation4], 256
    $region41: #{tpu_custom_call.1} parent=1 // pred_fallthru
      _
    %782 = vsyncpa [#allocation3], 1
    %783 = vsyncpa [#allocation6], 1
    %784 = vsyncpa [#allocation4], 1

</llo_original>
